<compile_context>
chip_gen: v5e
topology: v5e:2x2
jax: 0.10.0
libtpu: 0.0.40
codegen_flags: <defaults>
</compile_context>

<pallas_src>
import functools

import jax
import jax.numpy as jnp
from jax.experimental import pallas as pl
from jax.experimental.pallas import tpu as pltpu


# -----------------------------------------------------------------------------
# Kernel 1a (sr_ratio > 1): patchified stride-sr conv + LayerNorm + KV projection
# -----------------------------------------------------------------------------
def sr_ln_kv_kernel(xp_ref, wsr_ref, bsr_ref, g_ref, b_ref, wkv_ref, kv_ref, *, eps):
    """One grid step = one batch element.

    xp_ref : (1, Nk, sr*sr*C)  patchified input (host-side pure layout change)
    wsr_ref: (sr*sr*C, C)      conv weight flattened as (di, dj, cin) -> cout, bf16
    bsr_ref: (1, C)            conv bias (f32)
    g_ref  : (1, C)            LayerNorm gamma (f32)
    b_ref  : (1, C)            LayerNorm beta  (f32)
    wkv_ref: (C, 2C)           fused kv.weight^T, bf16
    kv_ref : (1, Nk, 2C)       bf16 output [K | V]
    """
    xp = xp_ref[0].astype(jnp.bfloat16)
    xr = jnp.dot(xp, wsr_ref[...], preferred_element_type=jnp.float32)
    xr = xr + bsr_ref[...]                                    # f32 bias add
    mu = jnp.mean(xr, axis=-1, keepdims=True)
    xc = xr - mu
    var = jnp.mean(xc * xc, axis=-1, keepdims=True)
    xn = xc * jax.lax.rsqrt(var + eps)                        # rsqrt -> EUP slot
    xn = (xn * g_ref[...] + b_ref[...]).astype(jnp.bfloat16)
    kv = jnp.dot(xn, wkv_ref[...], preferred_element_type=jnp.float32)
    kv_ref[0] = kv.astype(kv_ref.dtype)                       # lane-dense 2C store


# -----------------------------------------------------------------------------
# Kernel 1b (sr_ratio == 1): KV projection only
# -----------------------------------------------------------------------------
def kv_kernel(x_ref, wkv_ref, kv_ref):
    """x_ref: (1, TK, C), wkv_ref: (C, 2C) bf16, kv_ref: (1, TK, 2C) bf16."""
    xb = x_ref[0].astype(jnp.bfloat16)
    kv = jnp.dot(xb, wkv_ref[...], preferred_element_type=jnp.float32)
    kv_ref[0] = kv.astype(kv_ref.dtype)


# -----------------------------------------------------------------------------
# Kernel 2: fused q projection + per-head softmax attention + output projection
# -----------------------------------------------------------------------------
def attn_kernel(x_ref, kv_ref, wq_ref, wp_ref, bp_ref, o_ref, *, num_heads):
    """One grid step = (batch b, query-row tile i); all heads handled in-step.

    x_ref  : (1, TQ, C)   query-token tile (f32)
    kv_ref : (1, Nk, 2C)  precomputed [K | V] for this batch element (bf16)
    wq_ref : (C, C)       q.weight^T with softmax scale folded in, bf16
    wp_ref : (C, C)       proj.weight^T, bf16
    bp_ref : (1, C)       proj.bias (f32)
    o_ref  : (1, TQ, C)
    """
    xq = x_ref[0].astype(jnp.bfloat16)                        # (TQ, C)
    q = jnp.dot(xq, wq_ref[...],
                preferred_element_type=jnp.float32).astype(jnp.bfloat16)

    kv = kv_ref[0]                                            # (Nk, 2C) bf16
    C = q.shape[-1]
    hd = C // num_heads
    k = kv[:, :C]                                             # free 128-lane slice
    v = kv[:, C:]

    acc = jnp.zeros((q.shape[0], C), jnp.float32)
    for h in range(num_heads):                                # static, unrolled
        qh = q[:, h * hd:(h + 1) * hd]
        kh = k[:, h * hd:(h + 1) * hd]
        vh = v[:, h * hd:(h + 1) * hd]
        s = jax.lax.dot_general(qh, kh, (((1,), (1,)), ((), ())),
                                preferred_element_type=jnp.float32)   # (TQ, Nk)
        s = s - jnp.max(s, axis=-1, keepdims=True)            # f32 softmax
        p = jnp.exp(s)
        p = p * pl.reciprocal(jnp.sum(p, axis=-1, keepdims=True), approx=False)
        ctx_h = jnp.dot(p.astype(jnp.bfloat16), vh,
                        preferred_element_type=jnp.float32)   # (TQ, hd)
        # accumulate directly through the sublane-aligned wp row slice
        acc = acc + jnp.dot(ctx_h.astype(jnp.bfloat16),
                            wp_ref[h * hd:(h + 1) * hd, :],
                            preferred_element_type=jnp.float32)

    o_ref[0] = (acc + bp_ref[...]).astype(o_ref.dtype)        # lane-dense store


# -----------------------------------------------------------------------------
# Wrapper
# -----------------------------------------------------------------------------
def _pick_tile(n):
    """Largest (8,128)-friendly tile dividing n."""
    for t in (512, 256, 128):
        if n % t == 0:
            return t
    for t in range(min(n, 512) - (min(n, 512) % 8), 7, -8):
        if t > 0 and n % t == 0:
            return t
    return n  # fallback: single full block


def esa_pallas(x, params, H, W, num_heads, sr_ratio):
    """x: (B, N, C) with N == H*W.  Returns (B, N, C)."""
    wq, wk, wv, wsr, bsr, gamma, beta, wp, bp = params
    B, N, C = x.shape
    assert N == H * W and C % num_heads == 0
    hd = C // num_heads
    scale = hd ** -0.5

    # ---- host-side weight prep: fold scale, fuse kv, pre-cast to bf16 --------
    wq_s = (wq * scale).astype(jnp.bfloat16)          # (C, C)
    wkv = jnp.concatenate([wk, wv], axis=1).astype(jnp.bfloat16)   # (C, 2C)
    wp_b = wp.astype(jnp.bfloat16)                    # (C, C)

    # ---- kernel 1: produce fused KV tokens (B, Nk, 2C) in bf16 ---------------
    if sr_ratio > 1:
        Hs, Ws = H // sr_ratio, W // sr_ratio
        Nk = Hs * Ws
        cin = sr_ratio * sr_ratio * C
        wsr_b = wsr.astype(jnp.bfloat16)
        # stride-sr conv == non-overlapping patchify (pure layout) + matmul
        xp = (x.reshape(B, Hs, sr_ratio, Ws, sr_ratio, C)
               .transpose(0, 1, 3, 2, 4, 5)
               .reshape(B, Nk, cin))
        kv = pl.pallas_call(
            functools.partial(sr_ln_kv_kernel, eps=1e-5),
            out_shape=jax.ShapeDtypeStruct((B, Nk, 2 * C), jnp.bfloat16),
            grid_spec=pltpu.PrefetchScalarGridSpec(
                num_scalar_prefetch=0,
                grid=(B,),
                in_specs=[
                    pl.BlockSpec((1, Nk, cin), lambda b: (b, 0, 0)),   # xp
                    pl.BlockSpec((cin, C), lambda b: (0, 0)),          # wsr (bf16)
                    pl.BlockSpec((1, C), lambda b: (0, 0)),            # bsr
                    pl.BlockSpec((1, C), lambda b: (0, 0)),            # gamma
                    pl.BlockSpec((1, C), lambda b: (0, 0)),            # beta
                    pl.BlockSpec((C, 2 * C), lambda b: (0, 0)),        # wkv (bf16)
                ],
                out_specs=pl.BlockSpec((1, Nk, 2 * C), lambda b: (b, 0, 0)),
            ),
            compiler_params=pltpu.CompilerParams(
                dimension_semantics=("parallel",)),
        )(xp, wsr_b, bsr, gamma, beta, wkv)
        # TODO(synk): for full-resolution SegFormer stages, tile this kernel along Nk
        # as well (v7x has only 64 MiB VMEM); unnecessary at these shapes.
    else:
        Nk = N
        TK = _pick_tile(N)
        kv = pl.pallas_call(
            kv_kernel,
            out_shape=jax.ShapeDtypeStruct((B, Nk, 2 * C), jnp.bfloat16),
            grid_spec=pltpu.PrefetchScalarGridSpec(
                num_scalar_prefetch=0,
                grid=(B, N // TK),
                in_specs=[
                    pl.BlockSpec((1, TK, C), lambda b, i: (b, i, 0)),  # x
                    pl.BlockSpec((C, 2 * C), lambda b, i: (0, 0)),     # wkv (bf16)
                ],
                out_specs=pl.BlockSpec((1, TK, 2 * C), lambda b, i: (b, i, 0)),
            ),
            compiler_params=pltpu.CompilerParams(
                dimension_semantics=("parallel", "parallel")),
        )(x, wkv)

    # ---- kernel 2: fused attention -------------------------------------------
    TQ = _pick_tile(N)
    kernel = functools.partial(attn_kernel, num_heads=num_heads)
    return pl.pallas_call(
        kernel,
        out_shape=jax.ShapeDtypeStruct((B, N, C), x.dtype),
        grid_spec=pltpu.PrefetchScalarGridSpec(
            num_scalar_prefetch=0,
            grid=(B, N // TQ),
            in_specs=[
                pl.BlockSpec((1, TQ, C), lambda b, i: (b, i, 0)),       # x tile
                pl.BlockSpec((1, Nk, 2 * C), lambda b, i: (b, 0, 0)),   # kv tokens
                pl.BlockSpec((C, C), lambda b, i: (0, 0)),              # wq (scaled, bf16)
                pl.BlockSpec((C, C), lambda b, i: (0, 0)),              # wp (bf16)
                pl.BlockSpec((1, C), lambda b, i: (0, 0)),              # bp
            ],
            out_specs=pl.BlockSpec((1, TQ, C), lambda b, i: (b, i, 0)),
        ),
        compiler_params=pltpu.CompilerParams(
            dimension_semantics=("parallel", "parallel")),
    )(x, kv, wq_s, wp_b, bp)


# -----------------------------------------------------------------------------
# Pure-JAX reference mirroring the PyTorch forward (exact f32)
# -----------------------------------------------------------------------------
def esa_reference(x, params, H, W, num_heads, sr_ratio):
    wq, wk, wv, wsr, bsr, gamma, beta, wp, bp = params
    B, N, C = x.shape
    hd = C // num_heads
    scale = hd ** -0.5
    q = (x @ wq).reshape(B, N, num_heads, hd).transpose(0, 2, 1, 3)
    if sr_ratio > 1:
        Hs, Ws = H // sr_ratio, W // sr_ratio
        xp = (x.reshape(B, Hs, sr_ratio, Ws, sr_ratio, C)
               .transpose(0, 1, 3, 2, 4, 5)
               .reshape(B, Hs * Ws, sr_ratio * sr_ratio * C))
        xr = xp @ wsr + bsr[0]
        mu = xr.mean(-1, keepdims=True)
        var = ((xr - mu) ** 2).mean(-1, keepdims=True)
        xkv = (xr - mu) / jnp.sqrt(var + 1e-5) * gamma[0] + beta[0]
    else:
        xkv = x
    Nk = xkv.shape[1]
    k = (xkv @ wk).reshape(B, Nk, num_heads, hd).transpose(0, 2, 1, 3)
    v = (xkv @ wv).reshape(B, Nk, num_heads, hd).transpose(0, 2, 1, 3)
    attn = jax.nn.softmax(jnp.einsum("bhqd,bhkd->bhqk", q, k) * scale, axis=-1)
    ctx = jnp.einsum("bhqk,bhkd->bhqd", attn, v)
    ctx = ctx.transpose(0, 2, 1, 3).reshape(B, N, C)
    return ctx @ wp + bp[0]


def make_params(key, dim, sr_ratio):
    """Deterministic synthetic weights (PyTorch-like uniform fan-in init).

    Layout mapping to the PyTorch module:
      wq   = q.weight.T                      (C, C)
      wk   = kv.weight[:C].T                 (C, C)
      wv   = kv.weight[C:].T                 (C, C)
      wsr  = sr.weight (C,C,sr,sr).transpose(2,3,1,0).reshape(sr*sr*C, C)
      bsr  = sr.bias ; gamma/beta = norm.weight/bias
      wp   = proj.weight.T ; bp = proj.bias
    """
    ks = jax.random.split(key, 9)

    def unif(k, shape, fan_in):
        bound = 1.0 / jnp.sqrt(fan_in)
        return jax.random.uniform(k, shape, jnp.float32, -bound, bound)

    wq = unif(ks[0], (dim, dim), dim)
    wk = unif(ks[1], (dim, dim), dim)
    wv = unif(ks[2], (dim, dim), dim)
    fan_sr = dim * sr_ratio * sr_ratio
    wsr = unif(ks[3], (sr_ratio * sr_ratio * dim, dim), fan_sr)
    bsr = unif(ks[4], (1, dim), fan_sr)
    gamma = 1.0 + 0.1 * jax.random.normal(ks[5], (1, dim), jnp.float32)
    beta = 0.1 * jax.random.normal(ks[6], (1, dim), jnp.float32)
    wp = unif(ks[7], (dim, dim), dim)
    bp = unif(ks[8], (1, dim), dim)
    return (wq, wk, wv, wsr, bsr, gamma, beta, wp, bp)


if __name__ == "__main__":
    B, H, W = 2, 16, 16
    dim, num_heads, sr_ratio = 128, 4, 2
    N = H * W

    key = jax.random.PRNGKey(0)
    kx, kp = jax.random.split(key)
    x = jax.random.normal(kx, (B, N, dim), jnp.float32)
    params = make_params(kp, dim, sr_ratio)

    # Exercise both the sr_ratio>1 (conv+LayerNorm) path and the sr_ratio==1 path.
    for sr in (sr_ratio, 1):
        out = esa_pallas(x, params, H, W, num_heads, sr)
        out = jax.block_until_ready(out)
        ref = esa_reference(x, params, H, W, num_heads, sr)
        assert out.shape == (B, N, dim)
        err = float(jnp.max(jnp.abs(out - ref)))
        # bf16 MXU operands / bf16 KV storage (f32 accumulate & softmax stats).
        assert err < 5e-2, f"sr_ratio={sr}: max abs err {err}"

    print("KERNEL_OK")
</pallas_src>

<mosaic_0001>
module attributes {stable_mosaic.version = 11 : i64} {
  func.func @sr_ln_kv_kernel(%arg0: i32, %arg1: memref<1x64x512xf32, #tpu.memory_space<vmem>>, %arg2: memref<512x128xbf16, #tpu.memory_space<vmem>>, %arg3: memref<1x128xf32, #tpu.memory_space<vmem>>, %arg4: memref<1x128xf32, #tpu.memory_space<vmem>>, %arg5: memref<1x128xf32, #tpu.memory_space<vmem>>, %arg6: memref<128x256xbf16, #tpu.memory_space<vmem>>, %arg7: memref<1x64x256xbf16, #tpu.memory_space<vmem>>) attributes {dimension_semantics = [#tpu.dimension_semantics<parallel>], iteration_bounds = array<i64: 2>, scalar_prefetch = 0 : i64, scratch_operands = 0 : i64, tpu.core_type = #tpu.core_type<tc>, window_params = [{transform_indices = @transform_0, window_bounds = array<i64: 1, 64, 512>}, {pipeline_mode = #tpu.pipeline_mode<synchronous>, transform_indices = @transform_1, window_bounds = array<i64: 512, 128>}, {pipeline_mode = #tpu.pipeline_mode<synchronous>, transform_indices = @transform_2, window_bounds = array<i64: 1, 128>}, {pipeline_mode = #tpu.pipeline_mode<synchronous>, transform_indices = @transform_3, window_bounds = array<i64: 1, 128>}, {pipeline_mode = #tpu.pipeline_mode<synchronous>, transform_indices = @transform_4, window_bounds = array<i64: 1, 128>}, {pipeline_mode = #tpu.pipeline_mode<synchronous>, transform_indices = @transform_5, window_bounds = array<i64: 128, 256>}, {transform_indices = @transform_6, window_bounds = array<i64: 1, 64, 256>}]} {
    %c0 = arith.constant 0 : index
    %c0_0 = arith.constant 0 : index
    %c0_1 = arith.constant 0 : index
    %0 = vector.load %arg1[%c0, %c0_0, %c0_1] : memref<1x64x512xf32, #tpu.memory_space<vmem>>, vector<1x64x512xf32>
    %1 = vector.shape_cast %0 : vector<1x64x512xf32> to vector<64x512xf32>
    %2 = arith.truncf %1 : vector<64x512xf32> to vector<64x512xbf16>
    %c0_2 = arith.constant 0 : index
    %c0_3 = arith.constant 0 : index
    %3 = vector.load %arg2[%c0_2, %c0_3] : memref<512x128xbf16, #tpu.memory_space<vmem>>, vector<512x128xbf16>
    %cst = arith.constant dense<0.000000e+00> : vector<64x128xf32>
    %4 = tpu.matmul %2, %3, %cst {dimension_numbers = #tpu.dot_dimension_numbers<[1], [0], [0], [1], [0, 0, 1, 1], [], []>} : vector<64x512xbf16>, vector<512x128xbf16>, vector<64x128xf32> -> vector<64x128xf32>
    %c0_4 = arith.constant 0 : index
    %c0_5 = arith.constant 0 : index
    %5 = vector.load %arg3[%c0_4, %c0_5] : memref<1x128xf32, #tpu.memory_space<vmem>>, vector<1x128xf32>
    %6 = vector.broadcast %5 : vector<1x128xf32> to vector<64x128xf32>
    %7 = arith.addf %4, %6 : vector<64x128xf32>
    %cst_6 = arith.constant dense<0.000000e+00> : vector<64xf32>
    %8 = vector.multi_reduction <add>, %7, %cst_6 [1] : vector<64x128xf32> to vector<64xf32>
    %9 = vector.shape_cast %8 : vector<64xf32> to vector<64x1xf32>
    %cst_7 = arith.constant 1.280000e+02 : f32
    %10 = vector.broadcast %cst_7 : f32 to vector<64x1xf32>
    %11 = arith.divf %9, %10 : vector<64x1xf32>
    %12 = vector.broadcast %11 : vector<64x1xf32> to vector<64x128xf32>
    %13 = arith.subf %7, %12 : vector<64x128xf32>
    %14 = arith.mulf %13, %13 : vector<64x128xf32>
    %cst_8 = arith.constant dense<0.000000e+00> : vector<64xf32>
    %15 = vector.multi_reduction <add>, %14, %cst_8 [1] : vector<64x128xf32> to vector<64xf32>
    %16 = vector.shape_cast %15 : vector<64xf32> to vector<64x1xf32>
    %cst_9 = arith.constant 1.280000e+02 : f32
    %17 = vector.broadcast %cst_9 : f32 to vector<64x1xf32>
    %18 = arith.divf %16, %17 : vector<64x1xf32>
    %cst_10 = arith.constant 9.99999974E-6 : f32
    %19 = vector.broadcast %cst_10 : f32 to vector<64x1xf32>
    %20 = arith.addf %18, %19 : vector<64x1xf32>
    %21 = math.rsqrt %20 : vector<64x1xf32>
    %22 = vector.broadcast %21 : vector<64x1xf32> to vector<64x128xf32>
    %23 = arith.mulf %13, %22 : vector<64x128xf32>
    %c0_11 = arith.constant 0 : index
    %c0_12 = arith.constant 0 : index
    %24 = vector.load %arg4[%c0_11, %c0_12] : memref<1x128xf32, #tpu.memory_space<vmem>>, vector<1x128xf32>
    %25 = vector.broadcast %24 : vector<1x128xf32> to vector<64x128xf32>
    %26 = arith.mulf %23, %25 : vector<64x128xf32>
    %c0_13 = arith.constant 0 : index
    %c0_14 = arith.constant 0 : index
    %27 = vector.load %arg5[%c0_13, %c0_14] : memref<1x128xf32, #tpu.memory_space<vmem>>, vector<1x128xf32>
    %28 = vector.broadcast %27 : vector<1x128xf32> to vector<64x128xf32>
    %29 = arith.addf %26, %28 : vector<64x128xf32>
    %30 = arith.truncf %29 : vector<64x128xf32> to vector<64x128xbf16>
    %c0_15 = arith.constant 0 : index
    %c0_16 = arith.constant 0 : index
    %31 = vector.load %arg6[%c0_15, %c0_16] : memref<128x256xbf16, #tpu.memory_space<vmem>>, vector<128x256xbf16>
    %cst_17 = arith.constant dense<0.000000e+00> : vector<64x256xf32>
    %32 = tpu.matmul %30, %31, %cst_17 {dimension_numbers = #tpu.dot_dimension_numbers<[1], [0], [0], [1], [0, 0, 1, 1], [], []>} : vector<64x128xbf16>, vector<128x256xbf16>, vector<64x256xf32> -> vector<64x256xf32>
    %33 = arith.truncf %32 : vector<64x256xf32> to vector<64x256xbf16>
    %c0_18 = arith.constant 0 : index
    %c0_19 = arith.constant 0 : index
    %c0_20 = arith.constant 0 : index
    %34 = vector.load %arg7[%c0_18, %c0_19, %c0_20] : memref<1x64x256xbf16, #tpu.memory_space<vmem>>, vector<1x64x256xbf16>
    %35 = vector.shape_cast %34 : vector<1x64x256xbf16> to vector<64x256xbf16>
    %36 = vector.shape_cast %33 : vector<64x256xbf16> to vector<1x64x256xbf16>
    tpu.vector_store %arg7[%c0_18, %c0_19, %c0_20], %36 {strides = array<i32>} : memref<1x64x256xbf16, #tpu.memory_space<vmem>>, vector<1x64x256xbf16>,
    return
  }
  func.func @transform_0(%arg0: i32) -> (i32, i32, i32) {
    %c0_i32 = arith.constant 0 : i32
    %c0_i32_0 = arith.constant 0 : i32
    %c0_i32_1 = arith.constant 0 : i32
    return %arg0, %c0_i32, %c0_i32_0 : i32, i32, i32
  }
  func.func @transform_1(%arg0: i32) -> (i32, i32) {
    %c0_i32 = arith.constant 0 : i32
    %c0_i32_0 = arith.constant 0 : i32
    %c0_i32_1 = arith.constant 0 : i32
    return %c0_i32, %c0_i32_0 : i32, i32
  }
  func.func @transform_2(%arg0: i32) -> (i32, i32) {
    %c0_i32 = arith.constant 0 : i32
    %c0_i32_0 = arith.constant 0 : i32
    %c0_i32_1 = arith.constant 0 : i32
    return %c0_i32, %c0_i32_0 : i32, i32
  }
  func.func @transform_3(%arg0: i32) -> (i32, i32) {
    %c0_i32 = arith.constant 0 : i32
    %c0_i32_0 = arith.constant 0 : i32
    %c0_i32_1 = arith.constant 0 : i32
    return %c0_i32, %c0_i32_0 : i32, i32
  }
  func.func @transform_4(%arg0: i32) -> (i32, i32) {
    %c0_i32 = arith.constant 0 : i32
    %c0_i32_0 = arith.constant 0 : i32
    %c0_i32_1 = arith.constant 0 : i32
    return %c0_i32, %c0_i32_0 : i32, i32
  }
  func.func @transform_5(%arg0: i32) -> (i32, i32) {
    %c0_i32 = arith.constant 0 : i32
    %c0_i32_0 = arith.constant 0 : i32
    %c0_i32_1 = arith.constant 0 : i32
    return %c0_i32, %c0_i32_0 : i32, i32
  }
  func.func @transform_6(%arg0: i32) -> (i32, i32, i32) {
    %c0_i32 = arith.constant 0 : i32
    %c0_i32_0 = arith.constant 0 : i32
    %c0_i32_1 = arith.constant 0 : i32
    return %arg0, %c0_i32, %c0_i32_0 : i32, i32, i32
  }
}

</mosaic_0001>

<llo_original>
// kernel: tpu_custom_call.1
$region0: #{tpu_custom_call.1}
  #allocation0 [shape = 'u32[]', space=smem, size = 0x4, offset = 0x4, fixed_abs, tag = 'smem constant byte address 0x4 - core index']
  #allocation1 [shape = 'u32[72,128]{1,0:T(1,128)}', space=vmem, size = 0x9000, scoped, tag = 'internal scratch']
  %s0 = inlined_call_operand.hbm [shape: f32[2,64,512], index: 0, kind: input, shape index: {}]
  %s1 = inlined_call_operand.hbm [shape: bf16[512,128], index: 1, kind: input, shape index: {}]
  %s2 = inlined_call_operand.vmem [shape: f32[1,128], index: 2, kind: input, shape index: {}]
  %s3 = inlined_call_operand.vmem [shape: f32[1,128], index: 3, kind: input, shape index: {}]
  %s4 = inlined_call_operand.vmem [shape: f32[1,128], index: 4, kind: input, shape index: {}]
  %s5 = inlined_call_operand.hbm [shape: bf16[128,256], index: 5, kind: input, shape index: {}]
  %s6 = inlined_call_operand.hbm [shape: bf16[2,64,256], index: 6, kind: output, shape index: {}]
  %s7 = sld [smem:[#allocation0]]
  $region69: #{tpu_custom_call.1} parent=0
    _
  %s9 = ssub.s32 1, %s7
  %s10 = scalar_select 0, %s9, %s7
  $region1: #{tpu_custom_call.1} parent=0
    #allocation2 [shape = 'u8[262144]{0}', space=vmem, size = 0x40000, scoped, tag = 'input window, operand 0']
    #allocation3 [shape = 's32[2]{0}', space=sflag, size = 0x8, scoped, tag = 'scoped memory for tpu_custom_call.1']
    #allocation4 [shape = 's32[2]{0}', space=sflag, size = 0x8, scoped, tag = 'scoped memory for tpu_custom_call.1']
    #allocation5 [shape = 'u8[131072]{0}', space=vmem, size = 0x20000, scoped, tag = 'input window, operand 1, single buffered']
    #allocation6 [shape = 's32[1]{0}', space=sflag, size = 0x4, scoped, tag = 'scoped memory for tpu_custom_call.1']
    #allocation7 [shape = 'u8[65536]{0}', space=vmem, size = 0x10000, scoped, tag = 'input window, operand 5, single buffered']
    #allocation8 [shape = 'u8[65536]{0}', space=vmem, size = 0x10000, scoped, tag = 'output window, operand 0']
    %11 = vsyncpa [#allocation3], 0
    %s12 = scalar_lea.sflag [#allocation3], 1
    %13 = vsyncpa %s12, 0
    %14 = vsyncpa [#allocation6], 0
    %15 = vsyncpa [#allocation4], 0
    %s16 = scalar_lea.sflag [#allocation4], 1
    %17 = vsyncpa %s16, 0
    loop: start=0, step=1, limit=4
    $region2: #{tpu_custom_call.1} parent=1 // loop_pre_header
      _
    $region3: #{tpu_custom_call.1} parent=1 // loop_header
      %s19 = sphi 0, %s23
      %p20 = scmp.ge.s32.totalorder %s19, 4
      %s29 = sphi 0, %s31
      %s32 = sphi 0, %s29
      %s33 = sphi 0, %s32
      %s49 = sphi 0, %s33
      %s53 = sphi 0, %s53
      %s55 = sphi 0, %s53
      %s56 = sphi 0, %s55
      %s70 = sphi 0, %s56
      %s74 = sphi 0, %s74
      %s76 = sphi 0, %s74
      %s77 = sphi 0, %s76
      %s91 = sphi 0, %s77
      %s95 = sphi 0, %s95
      %s97 = sphi 0, %s95
      %s98 = sphi 0, %s97
      %s112 = sphi 0, %s98
      %s116 = sphi 0, %s116
      %s118 = sphi 0, %s116
      %s119 = sphi 0, %s118
      %s133 = sphi 0, %s119
      %s137 = sphi 0, %s137
      %s139 = sphi 0, %s137
      %s140 = sphi 0, %s139
      %s154 = sphi 0, %s140
      %s160 = sphi 0, %s162
      %s163 = sphi 0, %s160
      %s164 = sphi 0, %s163
      %s180 = sphi 0, %s164
    $region4: #{tpu_custom_call.1} parent=1 // loop_header_branch
      %22 = sbr.rel (%p20) target = $region8
    $region5: #{tpu_custom_call.1} parent=1 // loop_body
      %s24 = ssub.s32 %s19, 1
      %s25 = ssub.s32 %s19, 2
      %s26 = sadd.s32 %s19, 1
      %s27 = ssub.s32 %s19, %s26
      %p28 = scmp.eq.s32.totalorder %s27, 0
      %s30 = sadd.s32 %s29, 1
      %s31 = scalar_select %p28, %s29, %s30
      %p34 = pneg %p28
      %p35 = scmp.eq.s32.totalorder %s19, 1
      %p36 = por %p34, %p35
      %p37 = scmp.ne.s32.totalorder %s29, %s32
      %p38 = scmp.eq.s32.totalorder %s19, 0
      %p39 = por %p37, %p38
      %p40 = scmp.ne.s32.totalorder %s29, %s32
      %p41 = scmp.eq.s32.totalorder %s24, 1
      %p42 = por %p40, %p41
      %p43 = scmp.ne.s32.totalorder %s32, %s33
      %p44 = scmp.eq.s32.totalorder %s24, 0
      %p45 = por %p43, %p44
      %p46 = scmp.ne.s32.totalorder %s32, %s33
      %p47 = scmp.eq.s32.totalorder %s25, 1
      %p48 = por %p46, %p47
      %p50 = scmp.ne.s32.totalorder %s33, %s49
      %p51 = scmp.eq.s32.totalorder %s25, 0
      %p52 = por %p50, %p51
      %s54 = sadd.s32 %s53, 1
      %p57 = scmp.eq.s32.totalorder %s19, 1
      %p58 = scmp.ne.s32.totalorder %s53, %s55
      %p59 = scmp.eq.s32.totalorder %s19, 0
      %p60 = por %p58, %p59
      %p61 = scmp.ne.s32.totalorder %s53, %s55
      %p62 = scmp.eq.s32.totalorder %s24, 1
      %p63 = por %p61, %p62
      %p64 = scmp.ne.s32.totalorder %s55, %s56
      %p65 = scmp.eq.s32.totalorder %s24, 0
      %p66 = por %p64, %p65
      %p67 = scmp.ne.s32.totalorder %s55, %s56
      %p68 = scmp.eq.s32.totalorder %s25, 1
      %p69 = por %p67, %p68
      %p71 = scmp.ne.s32.totalorder %s56, %s70
      %p72 = scmp.eq.s32.totalorder %s25, 0
      %p73 = por %p71, %p72
      %s75 = sadd.s32 %s74, 1
      %p78 = scmp.eq.s32.totalorder %s19, 1
      %p79 = scmp.ne.s32.totalorder %s74, %s76
      %p80 = scmp.eq.s32.totalorder %s19, 0
      %p81 = por %p79, %p80
      %p82 = scmp.ne.s32.totalorder %s74, %s76
      %p83 = scmp.eq.s32.totalorder %s24, 1
      %p84 = por %p82, %p83
      %p85 = scmp.ne.s32.totalorder %s76, %s77
      %p86 = scmp.eq.s32.totalorder %s24, 0
      %p87 = por %p85, %p86
      %p88 = scmp.ne.s32.totalorder %s76, %s77
      %p89 = scmp.eq.s32.totalorder %s25, 1
      %p90 = por %p88, %p89
      %p92 = scmp.ne.s32.totalorder %s77, %s91
      %p93 = scmp.eq.s32.totalorder %s25, 0
      %p94 = por %p92, %p93
      %s96 = sadd.s32 %s95, 1
      %p99 = scmp.eq.s32.totalorder %s19, 1
      %p100 = scmp.ne.s32.totalorder %s95, %s97
      %p101 = scmp.eq.s32.totalorder %s19, 0
      %p102 = por %p100, %p101
      %p103 = scmp.ne.s32.totalorder %s95, %s97
      %p104 = scmp.eq.s32.totalorder %s24, 1
      %p105 = por %p103, %p104
      %p106 = scmp.ne.s32.totalorder %s97, %s98
      %p107 = scmp.eq.s32.totalorder %s24, 0
      %p108 = por %p106, %p107
      %p109 = scmp.ne.s32.totalorder %s97, %s98
      %p110 = scmp.eq.s32.totalorder %s25, 1
      %p111 = por %p109, %p110
      %p113 = scmp.ne.s32.totalorder %s98, %s112
      %p114 = scmp.eq.s32.totalorder %s25, 0
      %p115 = por %p113, %p114
      %s117 = sadd.s32 %s116, 1
      %p120 = scmp.eq.s32.totalorder %s19, 1
      %p121 = scmp.ne.s32.totalorder %s116, %s118
      %p122 = scmp.eq.s32.totalorder %s19, 0
      %p123 = por %p121, %p122
      %p124 = scmp.ne.s32.totalorder %s116, %s118
      %p125 = scmp.eq.s32.totalorder %s24, 1
      %p126 = por %p124, %p125
      %p127 = scmp.ne.s32.totalorder %s118, %s119
      %p128 = scmp.eq.s32.totalorder %s24, 0
      %p129 = por %p127, %p128
      %p130 = scmp.ne.s32.totalorder %s118, %s119
      %p131 = scmp.eq.s32.totalorder %s25, 1
      %p132 = por %p130, %p131
      %p134 = scmp.ne.s32.totalorder %s119, %s133
      %p135 = scmp.eq.s32.totalorder %s25, 0
      %p136 = por %p134, %p135
      %s138 = sadd.s32 %s137, 1
      %p141 = scmp.eq.s32.totalorder %s19, 1
      %p142 = scmp.ne.s32.totalorder %s137, %s139
      %p143 = scmp.eq.s32.totalorder %s19, 0
      %p144 = por %p142, %p143
      %p145 = scmp.ne.s32.totalorder %s137, %s139
      %p146 = scmp.eq.s32.totalorder %s24, 1
      %p147 = por %p145, %p146
      %p148 = scmp.ne.s32.totalorder %s139, %s140
      %p149 = scmp.eq.s32.totalorder %s24, 0
      %p150 = por %p148, %p149
      %p151 = scmp.ne.s32.totalorder %s139, %s140
      %p152 = scmp.eq.s32.totalorder %s25, 1
      %p153 = por %p151, %p152
      %p155 = scmp.ne.s32.totalorder %s140, %s154
      %p156 = scmp.eq.s32.totalorder %s25, 0
      %p157 = por %p155, %p156
      %s158 = ssub.s32 %s19, %s26
      %p159 = scmp.eq.s32.totalorder %s158, 0
      %s161 = sadd.s32 %s160, 1
      %s162 = scalar_select %p159, %s160, %s161
      %p165 = pneg %p159
      %p166 = scmp.eq.s32.totalorder %s19, 1
      %p167 = por %p165, %p166
      %p168 = scmp.ne.s32.totalorder %s160, %s163
      %p169 = scmp.eq.s32.totalorder %s19, 0
      %p170 = por %p168, %p169
      %p171 = scmp.ne.s32.totalorder %s160, %s163
      %p172 = scmp.eq.s32.totalorder %s24, 1
      %p173 = por %p171, %p172
      %p174 = scmp.ne.s32.totalorder %s163, %s164
      %p175 = scmp.eq.s32.totalorder %s24, 0
      %p176 = por %p174, %p175
      %p177 = scmp.ne.s32.totalorder %s163, %s164
      %p178 = scmp.eq.s32.totalorder %s25, 1
      %p179 = por %p177, %p178
      %p181 = scmp.ne.s32.totalorder %s164, %s180
      %p182 = scmp.eq.s32.totalorder %s25, 0
      %p183 = por %p181, %p182
      %p184 = scmp.le.s32.totalorder 1, %s19
      %p185 = scmp.lt.s32.totalorder %s19, 3
      %p186 = pnand %p184, %p185
      %p187 = pneg %p186
      // Predicated region
      $region9: #{tpu_custom_call.1} parent=5 // pred_check
        _
      $region10: #{tpu_custom_call.1} parent=5 // pred_check_branch
        %189 = sbr.rel (%p186) target = $region12
      $region11: #{tpu_custom_call.1} parent=5 // pred_region
        %s190 = ssub.s32 %s19, 1
        // Predicated region
        $region13: #{tpu_custom_call.1} parent=11 // pred_check
          %p191 = pneg %p66
        $region14: #{tpu_custom_call.1} parent=11 // pred_check_branch
          %193 = sbr.rel (%p191) target = $region16
        $region15: #{tpu_custom_call.1} parent=11 // pred_region
          %195 = vsyncadd [#allocation6], 0
          %s196 = sshll.u32 %s1, 4
          %s197 = int_to_ptr.hbm [resolvable:$true] %s196
          %s198 = sshll.u32 [#allocation5], 4
          %s199 = int_to_ptr.vmem [resolvable:$true] %s198
          %204 = dma.hbm_to_vmem [thread:$0]  %s197, 4096, %s199, [#allocation6], 64, 64, 4
        $region16: #{tpu_custom_call.1} parent=11 // pred_fallthru
          _
        // Predicated region
        $region17: #{tpu_custom_call.1} parent=11 // pred_check
          %p205 = pneg %p87
        $region18: #{tpu_custom_call.1} parent=11 // pred_check_branch
          %207 = sbr.rel (%p205) target = $region20
        $region19: #{tpu_custom_call.1} parent=11 // pred_region
          _
        $region20: #{tpu_custom_call.1} parent=11 // pred_fallthru
          _
        // Predicated region
        $region21: #{tpu_custom_call.1} parent=11 // pred_check
          %p208 = pneg %p108
        $region22: #{tpu_custom_call.1} parent=11 // pred_check_branch
          %210 = sbr.rel (%p208) target = $region24
        $region23: #{tpu_custom_call.1} parent=11 // pred_region
          _
        $region24: #{tpu_custom_call.1} parent=11 // pred_fallthru
          _
        // Predicated region
        $region25: #{tpu_custom_call.1} parent=11 // pred_check
          %p211 = pneg %p129
        $region26: #{tpu_custom_call.1} parent=11 // pred_check_branch
          %213 = sbr.rel (%p211) target = $region28
        $region27: #{tpu_custom_call.1} parent=11 // pred_region
          _
        $region28: #{tpu_custom_call.1} parent=11 // pred_fallthru
          _
        // Predicated region
        $region29: #{tpu_custom_call.1} parent=11 // pred_check
          %p214 = pneg %p150
        $region30: #{tpu_custom_call.1} parent=11 // pred_check_branch
          %216 = sbr.rel (%p214) target = $region32
        $region31: #{tpu_custom_call.1} parent=11 // pred_region
          %218 = vsyncadd [#allocation6], 0
          %s219 = sshll.u32 %s5, 4
          %s220 = int_to_ptr.hbm [resolvable:$true] %s219
          %s221 = sshll.u32 [#allocation7], 4
          %s222 = int_to_ptr.vmem [resolvable:$true] %s221
          %227 = dma.hbm_to_vmem [thread:$0]  %s220, 2048, %s222, [#allocation6], 128, 128, 8
        $region32: #{tpu_custom_call.1} parent=11 // pred_fallthru
          _
      $region12: #{tpu_custom_call.1} parent=5 // pred_fallthru
        _
      %p228 = scmp.lt.s32.totalorder %s19, 2
      // Predicated region
      $region33: #{tpu_custom_call.1} parent=5 // pred_check
        %p229 = pneg %p228
      $region34: #{tpu_custom_call.1} parent=5 // pred_check_branch
        %231 = sbr.rel (%p229) target = $region36
      $region35: #{tpu_custom_call.1} parent=5 // pred_region
        // Predicated region
        $region37: #{tpu_custom_call.1} parent=35 // pred_check
          %p232 = pneg %p39
        $region38: #{tpu_custom_call.1} parent=35 // pred_check_branch
          %234 = sbr.rel (%p232) target = $region40
        $region39: #{tpu_custom_call.1} parent=35 // pred_region
          %s235 = sand.u32 %s29, 1
          %s236 = scalar_lea.sflag [#allocation3], %s235
          %s237 = sand.u32 %s29, 1
          %s238 = smul.addr %s237, 256
          %s239 = scalar_lea.vmem [#allocation2], %s238
          %241 = vsyncadd %s236, 0
          %s242 = smul.addr %s19, 32
          %s243 = smul.addr %s242, 8
          %s244 = scalar_lea.hbm %s0, %s243
          %s245 = sshll.u32 %s244, 4
          %s246 = int_to_ptr.hbm [resolvable:$true] %s245
          %s247 = sshll.u32 %s239, 4
          %s248 = int_to_ptr.vmem [resolvable:$true] %s247
          %253 = dma.hbm_to_vmem [thread:$0]  %s246, 4096, %s248, %s236, 512, 512, 32
        $region40: #{tpu_custom_call.1} parent=35 // pred_fallthru
          _
      $region36: #{tpu_custom_call.1} parent=5 // pred_fallthru
        _
      %p254 = scmp.le.s32.totalorder 1, %s19
      %p255 = scmp.lt.s32.totalorder %s19, 3
      %p256 = pnand %p254, %p255
      %p257 = pneg %p256
      // Predicated region
      $region41: #{tpu_custom_call.1} parent=5 // pred_check
        _
      $region42: #{tpu_custom_call.1} parent=5 // pred_check_branch
        %259 = sbr.rel (%p256) target = $region44
      $region43: #{tpu_custom_call.1} parent=5 // pred_region
        %s260 = ssub.s32 %s19, 1
        %s261 = sand.u32 %s32, 1
        %s262 = scalar_lea.sflag [#allocation3], %s261
        %s263 = sand.u32 %s32, 1
        %s264 = smul.addr %s263, 256
        %s265 = scalar_lea.vmem [#allocation2], %s264
        // Predicated region
        $region45: #{tpu_custom_call.1} parent=43 // pred_check
          %p266 = pneg %p45
        $region46: #{tpu_custom_call.1} parent=43 // pred_check_branch
          %268 = sbr.rel (%p266) target = $region48
        $region47: #{tpu_custom_call.1} parent=43 // pred_region
          %270 = dma.done %s262, 4096
        $region48: #{tpu_custom_call.1} parent=43 // pred_fallthru
          _
        // Predicated region
        $region49: #{tpu_custom_call.1} parent=43 // pred_check
          %p271 = pneg %p66
        $region50: #{tpu_custom_call.1} parent=43 // pred_check_branch
          %273 = sbr.rel (%p271) target = $region52
        $region51: #{tpu_custom_call.1} parent=43 // pred_region
          %275 = dma.done [#allocation6], 4096
        $region52: #{tpu_custom_call.1} parent=43 // pred_fallthru
          _
        // Predicated region
        $region53: #{tpu_custom_call.1} parent=43 // pred_check
          %p276 = pneg %p150
        $region54: #{tpu_custom_call.1} parent=43 // pred_check_branch
          %278 = sbr.rel (%p276) target = $region56
        $region55: #{tpu_custom_call.1} parent=43 // pred_region
          %280 = dma.done [#allocation6], 2048
        $region56: #{tpu_custom_call.1} parent=43 // pred_fallthru
          _
        %s281 = sand.u32 %s32, 1
        %s282 = scalar_lea.sflag [#allocation3], %s281
        %s283 = sand.u32 %s32, 1
        %s284 = smul.addr %s283, 256
        %s285 = scalar_lea.vmem [#allocation2], %s284
        %p286 = pneg %p45
        %p287 = pneg %p42
        %p288 = pneg %p66
        %p289 = pneg %p63
        %p290 = pneg %p87
        %p291 = pneg %p84
        %p292 = pneg %p108
        %p293 = pneg %p105
        %p294 = pneg %p129
        %p295 = pneg %p126
        %p296 = pneg %p150
        %p297 = pneg %p147
        %p298 = pneg %p176
        %p299 = pneg %p173
        %s300 = sand.u32 %s163, 1
        %s301 = scalar_lea.sflag [#allocation4], %s300
        %s302 = sand.u32 %s163, 1
        %s303 = smul.addr %s302, 64
        %s304 = scalar_lea.vmem [#allocation8], %s303
        %v305 = vld [vmem:[%s265] sm:$0xff]
        %v306 = vld [vmem:[%s265 + $0x8] sm:$0xff]
        %v307 = vld [vmem:[%s265 + $0x10] sm:$0xff]
        %v308 = vld [vmem:[%s265 + $0x18] sm:$0xff]
        %v309 = vld [vmem:[%s265 + $0x20] sm:$0xff]
        %v310 = vld [vmem:[%s265 + $0x28] sm:$0xff]
        %v311 = vld [vmem:[%s265 + $0x30] sm:$0xff]
        %v312 = vld [vmem:[%s265 + $0x38] sm:$0xff]
        %v313 = vld [vmem:[%s265 + $0x40] sm:$0xff]
        %v314 = vld [vmem:[%s265 + $0x48] sm:$0xff]
        %v315 = vld [vmem:[%s265 + $0x50] sm:$0xff]
        %v316 = vld [vmem:[%s265 + $0x58] sm:$0xff]
        %v317 = vld [vmem:[%s265 + $0x60] sm:$0xff]
        %v318 = vld [vmem:[%s265 + $0x68] sm:$0xff]
        %v319 = vld [vmem:[%s265 + $0x70] sm:$0xff]
        %v320 = vld [vmem:[%s265 + $0x78] sm:$0xff]
        %v321 = vld [vmem:[%s265 + $0x80] sm:$0xff]
        %v322 = vld [vmem:[%s265 + $0x88] sm:$0xff]
        %v323 = vld [vmem:[%s265 + $0x90] sm:$0xff]
        %v324 = vld [vmem:[%s265 + $0x98] sm:$0xff]
        %v325 = vld [vmem:[%s265 + $0xa0] sm:$0xff]
        %v326 = vld [vmem:[%s265 + $0xa8] sm:$0xff]
        %v327 = vld [vmem:[%s265 + $0xb0] sm:$0xff]
        %v328 = vld [vmem:[%s265 + $0xb8] sm:$0xff]
        %v329 = vld [vmem:[%s265 + $0xc0] sm:$0xff]
        %v330 = vld [vmem:[%s265 + $0xc8] sm:$0xff]
        %v331 = vld [vmem:[%s265 + $0xd0] sm:$0xff]
        %v332 = vld [vmem:[%s265 + $0xd8] sm:$0xff]
        %v333 = vld [vmem:[%s265 + $0xe0] sm:$0xff]
        %v334 = vld [vmem:[%s265 + $0xe8] sm:$0xff]
        %v335 = vld [vmem:[%s265 + $0xf0] sm:$0xff]
        %v336 = vld [vmem:[%s265 + $0xf8] sm:$0xff]
        %v337 = vpack.c.bf16 %v309, %v305
        %v338 = vpack.c.bf16 %v310, %v306
        %v339 = vpack.c.bf16 %v311, %v307
        %v340 = vpack.c.bf16 %v312, %v308
        %v341 = vpack.c.bf16 %v317, %v313
        %v342 = vpack.c.bf16 %v318, %v314
        %v343 = vpack.c.bf16 %v319, %v315
        %v344 = vpack.c.bf16 %v320, %v316
        %v345 = vpack.c.bf16 %v325, %v321
        %v346 = vpack.c.bf16 %v326, %v322
        %v347 = vpack.c.bf16 %v327, %v323
        %v348 = vpack.c.bf16 %v328, %v324
        %v349 = vpack.c.bf16 %v333, %v329
        %v350 = vpack.c.bf16 %v334, %v330
        %v351 = vpack.c.bf16 %v335, %v331
        %v352 = vpack.c.bf16 %v336, %v332
        %v353 = vld [vmem:[#allocation5] sm:$0xf]
        %v354 = vld [vmem:[#allocation5 + $0x4] sm:$0xf]
        %v355 = vld [vmem:[#allocation5 + $0x8] sm:$0xf]
        %v356 = vld [vmem:[#allocation5 + $0xc] sm:$0xf]
        %v357 = vld [vmem:[#allocation5 + $0x10] sm:$0xf]
        %v358 = vld [vmem:[#allocation5 + $0x14] sm:$0xf]
        %v359 = vld [vmem:[#allocation5 + $0x18] sm:$0xf]
        %v360 = vld [vmem:[#allocation5 + $0x1c] sm:$0xf]
        %v361 = vld [vmem:[#allocation5 + $0x20] sm:$0xf]
        %v362 = vld [vmem:[#allocation5 + $0x24] sm:$0xf]
        %v363 = vld [vmem:[#allocation5 + $0x28] sm:$0xf]
        %v364 = vld [vmem:[#allocation5 + $0x2c] sm:$0xf]
        %v365 = vld [vmem:[#allocation5 + $0x30] sm:$0xf]
        %v366 = vld [vmem:[#allocation5 + $0x34] sm:$0xf]
        %v367 = vld [vmem:[#allocation5 + $0x38] sm:$0xf]
        %v368 = vld [vmem:[#allocation5 + $0x3c] sm:$0xf]
        %v369 = vld [vmem:[#allocation5 + $0x40] sm:$0xf]
        %v370 = vld [vmem:[#allocation5 + $0x44] sm:$0xf]
        %v371 = vld [vmem:[#allocation5 + $0x48] sm:$0xf]
        %v372 = vld [vmem:[#allocation5 + $0x4c] sm:$0xf]
        %v373 = vld [vmem:[#allocation5 + $0x50] sm:$0xf]
        %v374 = vld [vmem:[#allocation5 + $0x54] sm:$0xf]
        %v375 = vld [vmem:[#allocation5 + $0x58] sm:$0xf]
        %v376 = vld [vmem:[#allocation5 + $0x5c] sm:$0xf]
        %v377 = vld [vmem:[#allocation5 + $0x60] sm:$0xf]
        %v378 = vld [vmem:[#allocation5 + $0x64] sm:$0xf]
        %v379 = vld [vmem:[#allocation5 + $0x68] sm:$0xf]
        %v380 = vld [vmem:[#allocation5 + $0x6c] sm:$0xf]
        %v381 = vld [vmem:[#allocation5 + $0x70] sm:$0xf]
        %v382 = vld [vmem:[#allocation5 + $0x74] sm:$0xf]
        %v383 = vld [vmem:[#allocation5 + $0x78] sm:$0xf]
        %v384 = vld [vmem:[#allocation5 + $0x7c] sm:$0xf]
        %v385 = vld [vmem:[#allocation5 + $0x80] sm:$0xf]
        %v386 = vld [vmem:[#allocation5 + $0x84] sm:$0xf]
        %v387 = vld [vmem:[#allocation5 + $0x88] sm:$0xf]
        %v388 = vld [vmem:[#allocation5 + $0x8c] sm:$0xf]
        %v389 = vld [vmem:[#allocation5 + $0x90] sm:$0xf]
        %v390 = vld [vmem:[#allocation5 + $0x94] sm:$0xf]
        %v391 = vld [vmem:[#allocation5 + $0x98] sm:$0xf]
        %v392 = vld [vmem:[#allocation5 + $0x9c] sm:$0xf]
        %v393 = vld [vmem:[#allocation5 + $0xa0] sm:$0xf]
        %v394 = vld [vmem:[#allocation5 + $0xa4] sm:$0xf]
        %v395 = vld [vmem:[#allocation5 + $0xa8] sm:$0xf]
        %v396 = vld [vmem:[#allocation5 + $0xac] sm:$0xf]
        %v397 = vld [vmem:[#allocation5 + $0xb0] sm:$0xf]
        %v398 = vld [vmem:[#allocation5 + $0xb4] sm:$0xf]
        %v399 = vld [vmem:[#allocation5 + $0xb8] sm:$0xf]
        %v400 = vld [vmem:[#allocation5 + $0xbc] sm:$0xf]
        %v401 = vld [vmem:[#allocation5 + $0xc0] sm:$0xf]
        %v402 = vld [vmem:[#allocation5 + $0xc4] sm:$0xf]
        %v403 = vld [vmem:[#allocation5 + $0xc8] sm:$0xf]
        %v404 = vld [vmem:[#allocation5 + $0xcc] sm:$0xf]
        %v405 = vld [vmem:[#allocation5 + $0xd0] sm:$0xf]
        %v406 = vld [vmem:[#allocation5 + $0xd4] sm:$0xf]
        %v407 = vld [vmem:[#allocation5 + $0xd8] sm:$0xf]
        %v408 = vld [vmem:[#allocation5 + $0xdc] sm:$0xf]
        %v409 = vld [vmem:[#allocation5 + $0xe0] sm:$0xf]
        %v410 = vld [vmem:[#allocation5 + $0xe4] sm:$0xf]
        %v411 = vld [vmem:[#allocation5 + $0xe8] sm:$0xf]
        %v412 = vld [vmem:[#allocation5 + $0xec] sm:$0xf]
        %v413 = vld [vmem:[#allocation5 + $0xf0] sm:$0xf]
        %v414 = vld [vmem:[#allocation5 + $0xf4] sm:$0xf]
        %v415 = vld [vmem:[#allocation5 + $0xf8] sm:$0xf]
        %v416 = vld [vmem:[#allocation5 + $0xfc] sm:$0xf]
        %v417 = vld [vmem:[%s2] sm:$0x1]
        %v419 = vperm.slane %v417, 0
        %v485 = vunpack.c.l.b16 %v353
        %v486 = vunpack.c.l.b16 %v354
        %v487 = vunpack.c.l.b16 %v355
        %v488 = vunpack.c.l.b16 %v356
        %v489 = vunpack.c.l.b16 %v357
        %v490 = vunpack.c.l.b16 %v358
        %v491 = vunpack.c.l.b16 %v359
        %v492 = vunpack.c.l.b16 %v360
        %v493 = vunpack.c.l.b16 %v361
        %v494 = vunpack.c.l.b16 %v362
        %v495 = vunpack.c.l.b16 %v363
        %v496 = vunpack.c.l.b16 %v364
        %v497 = vunpack.c.l.b16 %v365
        %v498 = vunpack.c.l.b16 %v366
        %v499 = vunpack.c.l.b16 %v367
        %v500 = vunpack.c.l.b16 %v368
        %v501 = vunpack.c.l.b16 %v369
        %v502 = vunpack.c.l.b16 %v370
        %v503 = vunpack.c.l.b16 %v371
        %v504 = vunpack.c.l.b16 %v372
        %v505 = vunpack.c.l.b16 %v373
        %v506 = vunpack.c.l.b16 %v374
        %v507 = vunpack.c.l.b16 %v375
        %v508 = vunpack.c.l.b16 %v376
        %v509 = vunpack.c.l.b16 %v377
        %v510 = vunpack.c.l.b16 %v378
        %v511 = vunpack.c.l.b16 %v379
        %v512 = vunpack.c.l.b16 %v380
        %v513 = vunpack.c.l.b16 %v381
        %v514 = vunpack.c.l.b16 %v382
        %v515 = vunpack.c.l.b16 %v383
        %v516 = vunpack.c.l.b16 %v384
        %v517 = vunpack.c.l.b16 %v385
        %v518 = vunpack.c.l.b16 %v386
        %v519 = vunpack.c.l.b16 %v387
        %v520 = vunpack.c.l.b16 %v388
        %v521 = vunpack.c.l.b16 %v389
        %v522 = vunpack.c.l.b16 %v390
        %v523 = vunpack.c.l.b16 %v391
        %v524 = vunpack.c.l.b16 %v392
        %v525 = vunpack.c.l.b16 %v393
        %v526 = vunpack.c.l.b16 %v394
        %v527 = vunpack.c.l.b16 %v395
        %v528 = vunpack.c.l.b16 %v396
        %v529 = vunpack.c.l.b16 %v397
        %v530 = vunpack.c.l.b16 %v398
        %v531 = vunpack.c.l.b16 %v399
        %v532 = vunpack.c.l.b16 %v400
        %v533 = vunpack.c.l.b16 %v401
        %v534 = vunpack.c.l.b16 %v402
        %v535 = vunpack.c.l.b16 %v403
        %v536 = vunpack.c.l.b16 %v404
        %v537 = vunpack.c.l.b16 %v405
        %v538 = vunpack.c.l.b16 %v406
        %v539 = vunpack.c.l.b16 %v407
        %v540 = vunpack.c.l.b16 %v408
        %v541 = vunpack.c.l.b16 %v409
        %v542 = vunpack.c.l.b16 %v410
        %v543 = vunpack.c.l.b16 %v411
        %v544 = vunpack.c.l.b16 %v412
        %v545 = vunpack.c.l.b16 %v413
        %v546 = vunpack.c.l.b16 %v414
        %v547 = vunpack.c.l.b16 %v415
        %v548 = vunpack.c.l.b16 %v416
        %v549 = vpack.c.b16 %v486, %v485
        %v550 = vpack.c.b16 %v488, %v487
        %v551 = vpack.c.b16 %v490, %v489
        %v552 = vpack.c.b16 %v492, %v491
        %v553 = vpack.c.b16 %v494, %v493
        %v554 = vpack.c.b16 %v496, %v495
        %v555 = vpack.c.b16 %v498, %v497
        %v556 = vpack.c.b16 %v500, %v499
        %v557 = vpack.c.b16 %v502, %v501
        %v558 = vpack.c.b16 %v504, %v503
        %v559 = vpack.c.b16 %v506, %v505
        %v560 = vpack.c.b16 %v508, %v507
        %v561 = vpack.c.b16 %v510, %v509
        %v562 = vpack.c.b16 %v512, %v511
        %v563 = vpack.c.b16 %v514, %v513
        %v564 = vpack.c.b16 %v516, %v515
        %v565 = vpack.c.b16 %v518, %v517
        %v566 = vpack.c.b16 %v520, %v519
        %v567 = vpack.c.b16 %v522, %v521
        %v568 = vpack.c.b16 %v524, %v523
        %v569 = vpack.c.b16 %v526, %v525
        %v570 = vpack.c.b16 %v528, %v527
        %v571 = vpack.c.b16 %v530, %v529
        %v572 = vpack.c.b16 %v532, %v531
        %v573 = vpack.c.b16 %v534, %v533
        %v574 = vpack.c.b16 %v536, %v535
        %v575 = vpack.c.b16 %v538, %v537
        %v576 = vpack.c.b16 %v540, %v539
        %v577 = vpack.c.b16 %v542, %v541
        %v578 = vpack.c.b16 %v544, %v543
        %v579 = vpack.c.b16 %v546, %v545
        %v580 = vpack.c.b16 %v548, %v547
        %613 = vmatpush.bf16.msra.mxu0 %v556
        %614 = vmatpush.bf16.msra.mxu0 %v555
        %615 = vmatpush.bf16.msra.mxu0 %v554
        %616 = vmatpush.bf16.msra.mxu0 %v553
        %617 = vmatpush.bf16.msra.mxu0 %v552
        %618 = vmatpush.bf16.msra.mxu0 %v551
        %619 = vmatpush.bf16.msra.mxu0 %v550
        %620 = vmatpush.bf16.msra.mxu0 %v549
        %621 = vmatmul.bf16.gmra.mxu0 %v337
        %v622 = vpop.f32.mrf.mxu0
        %v623 = vadd.f32 %v419, %v622
        %v624 = vpop.f32.mrf.mxu0
        %v625 = vadd.f32 %v419, %v624
        %626 = vmatmul.bf16.gmra.mxu0 %v341
        %v627 = vpop.f32.mrf.mxu0
        %v628 = vadd.f32 %v419, %v627
        %v629 = vpop.f32.mrf.mxu0
        %v630 = vadd.f32 %v419, %v629
        %631 = vmatmul.bf16.gmra.mxu0 %v345
        %v632 = vpop.f32.mrf.mxu0
        %v633 = vadd.f32 %v419, %v632
        %v634 = vpop.f32.mrf.mxu0
        %v635 = vadd.f32 %v419, %v634
        %636 = vmatmul.bf16.gmra.mxu0 %v349
        %v637 = vpop.f32.mrf.mxu0
        %v638 = vadd.f32 %v419, %v637
        %v639 = vpop.f32.mrf.mxu0
        %v640 = vadd.f32 %v419, %v639
        %641 = vdwg.mxu0
        %642 = vmatpush.bf16.msra.mxu0 %v564
        %643 = vmatpush.bf16.msra.mxu0 %v563
        %644 = vmatpush.bf16.msra.mxu0 %v562
        %645 = vmatpush.bf16.msra.mxu0 %v561
        %646 = vmatpush.bf16.msra.mxu0 %v560
        %647 = vmatpush.bf16.msra.mxu0 %v559
        %648 = vmatpush.bf16.msra.mxu0 %v558
        %649 = vmatpush.bf16.msra.mxu0 %v557
        %650 = vmatmul.bf16.gmra.mxu0 %v338
        %v651 = vpop.f32.mrf.mxu0
        %v652 = vadd.f32 %v623, %v651
        %v653 = vpop.f32.mrf.mxu0
        %v654 = vadd.f32 %v625, %v653
        %655 = vmatmul.bf16.gmra.mxu0 %v342
        %v656 = vpop.f32.mrf.mxu0
        %v657 = vadd.f32 %v628, %v656
        %v658 = vpop.f32.mrf.mxu0
        %v659 = vadd.f32 %v630, %v658
        %660 = vmatmul.bf16.gmra.mxu0 %v346
        %v661 = vpop.f32.mrf.mxu0
        %v662 = vadd.f32 %v633, %v661
        %v663 = vpop.f32.mrf.mxu0
        %v664 = vadd.f32 %v635, %v663
        %665 = vmatmul.bf16.gmra.mxu0 %v350
        %v666 = vpop.f32.mrf.mxu0
        %v667 = vadd.f32 %v638, %v666
        %v668 = vpop.f32.mrf.mxu0
        %v669 = vadd.f32 %v640, %v668
        %670 = vdwg.mxu0
        %671 = vmatpush.bf16.msra.mxu0 %v572
        %672 = vmatpush.bf16.msra.mxu0 %v571
        %673 = vmatpush.bf16.msra.mxu0 %v570
        %674 = vmatpush.bf16.msra.mxu0 %v569
        %675 = vmatpush.bf16.msra.mxu0 %v568
        %676 = vmatpush.bf16.msra.mxu0 %v567
        %677 = vmatpush.bf16.msra.mxu0 %v566
        %678 = vmatpush.bf16.msra.mxu0 %v565
        %679 = vmatmul.bf16.gmra.mxu0 %v339
        %v680 = vpop.f32.mrf.mxu0
        %v681 = vadd.f32 %v652, %v680
        %v682 = vpop.f32.mrf.mxu0
        %v683 = vadd.f32 %v654, %v682
        %684 = vmatmul.bf16.gmra.mxu0 %v343
        %v685 = vpop.f32.mrf.mxu0
        %v686 = vadd.f32 %v657, %v685
        %v687 = vpop.f32.mrf.mxu0
        %v688 = vadd.f32 %v659, %v687
        %689 = vmatmul.bf16.gmra.mxu0 %v347
        %v690 = vpop.f32.mrf.mxu0
        %v691 = vadd.f32 %v662, %v690
        %v692 = vpop.f32.mrf.mxu0
        %v693 = vadd.f32 %v664, %v692
        %694 = vmatmul.bf16.gmra.mxu0 %v351
        %v695 = vpop.f32.mrf.mxu0
        %v696 = vadd.f32 %v667, %v695
        %v697 = vpop.f32.mrf.mxu0
        %v698 = vadd.f32 %v669, %v697
        %699 = vdwg.mxu0
        %700 = vmatpush.bf16.msra.mxu0 %v580
        %701 = vmatpush.bf16.msra.mxu0 %v579
        %702 = vmatpush.bf16.msra.mxu0 %v578
        %703 = vmatpush.bf16.msra.mxu0 %v577
        %704 = vmatpush.bf16.msra.mxu0 %v576
        %705 = vmatpush.bf16.msra.mxu0 %v575
        %706 = vmatpush.bf16.msra.mxu0 %v574
        %707 = vmatpush.bf16.msra.mxu0 %v573
        %708 = vmatmul.bf16.gmra.mxu0 %v340
        %v709 = vpop.f32.mrf.mxu0
        %v710 = vadd.f32 %v681, %v709
        %v711 = vpop.f32.mrf.mxu0
        %v712 = vadd.f32 %v683, %v711
        %713 = vmatmul.bf16.gmra.mxu0 %v344
        %v714 = vpop.f32.mrf.mxu0
        %v715 = vadd.f32 %v686, %v714
        %v716 = vpop.f32.mrf.mxu0
        %v717 = vadd.f32 %v688, %v716
        %718 = vmatmul.bf16.gmra.mxu0 %v348
        %v719 = vpop.f32.mrf.mxu0
        %v720 = vadd.f32 %v691, %v719
        %v721 = vpop.f32.mrf.mxu0
        %v722 = vadd.f32 %v693, %v721
        %723 = vmatmul.bf16.gmra.mxu0 %v352
        %v724 = vpop.f32.mrf.mxu0
        %v725 = vadd.f32 %v696, %v724
        %v726 = vpop.f32.mrf.mxu0
        %v727 = vadd.f32 %v698, %v726
        %728 = vdwg.mxu0
        %729 = vadd.xlane.f32.xlu0 %v710
        %v730 = vpop.xlane.xlu0 %729
        %731 = vadd.xlane.f32.xlu0 %v712
        %v732 = vpop.xlane.xlu0 %731
        %733 = vadd.xlane.f32.xlu0 %v715
        %v734 = vpop.xlane.xlu0 %733
        %735 = vadd.xlane.f32.xlu0 %v717
        %v736 = vpop.xlane.xlu0 %735
        %737 = vadd.xlane.f32.xlu0 %v720
        %v738 = vpop.xlane.xlu0 %737
        %739 = vadd.xlane.f32.xlu0 %v722
        %v740 = vpop.xlane.xlu0 %739
        %741 = vadd.xlane.f32.xlu0 %v725
        %v742 = vpop.xlane.xlu0 %741
        %743 = vadd.xlane.f32.xlu0 %v727
        %v744 = vpop.xlane.xlu0 %743
        %v745 = vrcp.pop 128.0
        %v746 = vmul.f32 128.0, %v745
        %v747 = vsub.f32 1.0, %v746
        %v748 = vmul.f32 %v745, %v747
        %v749 = vadd.f32 %v745, %v748
        %vm750 = vweird.f32 %v745
        %v751 = vsel %vm750, %v745, %v749
        %v752 = vmul.f32 %v730, %v751
        %v753 = vmul.f32 %v732, %v751
        %v754 = vmul.f32 %v734, %v751
        %v755 = vmul.f32 %v736, %v751
        %v756 = vmul.f32 %v738, %v751
        %v757 = vmul.f32 %v740, %v751
        %v758 = vmul.f32 %v742, %v751
        %v759 = vmul.f32 %v744, %v751
        %v760 = vsub.f32 %v710, %v752
        %v761 = vsub.f32 %v712, %v753
        %v762 = vsub.f32 %v715, %v754
        %v763 = vsub.f32 %v717, %v755
        %v764 = vsub.f32 %v720, %v756
        %v765 = vsub.f32 %v722, %v757
        %v766 = vsub.f32 %v725, %v758
        %v767 = vsub.f32 %v727, %v759
        %v768 = vmul.f32 %v760, %v760
        %v769 = vmul.f32 %v761, %v761
        %v770 = vmul.f32 %v762, %v762
        %v771 = vmul.f32 %v763, %v763
        %v772 = vmul.f32 %v764, %v764
        %v773 = vmul.f32 %v765, %v765
        %v774 = vmul.f32 %v766, %v766
        %v775 = vmul.f32 %v767, %v767
        %776 = vadd.xlane.f32.xlu0 %v768
        %v777 = vpop.xlane.xlu0 %776
        %778 = vadd.xlane.f32.xlu0 %v769
        %v779 = vpop.xlane.xlu0 %778
        %780 = vadd.xlane.f32.xlu0 %v770
        %v781 = vpop.xlane.xlu0 %780
        %782 = vadd.xlane.f32.xlu0 %v771
        %v783 = vpop.xlane.xlu0 %782
        %784 = vadd.xlane.f32.xlu0 %v772
        %v785 = vpop.xlane.xlu0 %784
        %786 = vadd.xlane.f32.xlu0 %v773
        %v787 = vpop.xlane.xlu0 %786
        %788 = vadd.xlane.f32.xlu0 %v774
        %v789 = vpop.xlane.xlu0 %788
        %790 = vadd.xlane.f32.xlu0 %v775
        %v791 = vpop.xlane.xlu0 %790
        %v792 = vmul.f32 %v777, %v751
        %v793 = vmul.f32 %v779, %v751
        %v794 = vmul.f32 %v781, %v751
        %v795 = vmul.f32 %v783, %v751
        %v796 = vmul.f32 %v785, %v751
        %v797 = vmul.f32 %v787, %v751
        %v798 = vmul.f32 %v789, %v751
        %v799 = vmul.f32 %v791, %v751
        %v800 = vadd.f32 %v792, 1e-05
        %v801 = vadd.f32 %v793, 1e-05
        %v802 = vadd.f32 %v794, 1e-05
        %v803 = vadd.f32 %v795, 1e-05
        %v804 = vadd.f32 %v796, 1e-05
        %v805 = vadd.f32 %v797, 1e-05
        %v806 = vadd.f32 %v798, 1e-05
        %v807 = vadd.f32 %v799, 1e-05
        %v808 = vrsqrt.pop %v800
        %v809 = vmul.f32 %v808, %v800
        %v810 = vmul.f32 %v809, %v808
        %v811 = vmul.f32 0.5, %v810
        %v812 = vsub.f32 1.5, %v811
        %v813 = vmul.f32 %v808, %v812
        %vm814 = vweird.f32 %v800
        %vm815 = vweird.f32 %v808
        %vm816 = vmor %vm814, %vm815
        %v817 = vsel %vm816, %v808, %v813
        %v818 = vrsqrt.pop %v801
        %v819 = vmul.f32 %v818, %v801
        %v820 = vmul.f32 %v819, %v818
        %v821 = vmul.f32 0.5, %v820
        %v822 = vsub.f32 1.5, %v821
        %v823 = vmul.f32 %v818, %v822
        %vm824 = vweird.f32 %v801
        %vm825 = vweird.f32 %v818
        %vm826 = vmor %vm824, %vm825
        %v827 = vsel %vm826, %v818, %v823
        %v828 = vrsqrt.pop %v802
        %v829 = vmul.f32 %v828, %v802
        %v830 = vmul.f32 %v829, %v828
        %v831 = vmul.f32 0.5, %v830
        %v832 = vsub.f32 1.5, %v831
        %v833 = vmul.f32 %v828, %v832
        %vm834 = vweird.f32 %v802
        %vm835 = vweird.f32 %v828
        %vm836 = vmor %vm834, %vm835
        %v837 = vsel %vm836, %v828, %v833
        %v838 = vrsqrt.pop %v803
        %v839 = vmul.f32 %v838, %v803
        %v840 = vmul.f32 %v839, %v838
        %v841 = vmul.f32 0.5, %v840
        %v842 = vsub.f32 1.5, %v841
        %v843 = vmul.f32 %v838, %v842
        %vm844 = vweird.f32 %v803
        %vm845 = vweird.f32 %v838
        %vm846 = vmor %vm844, %vm845
        %v847 = vsel %vm846, %v838, %v843
        %v848 = vrsqrt.pop %v804
        %v849 = vmul.f32 %v848, %v804
        %v850 = vmul.f32 %v849, %v848
        %v851 = vmul.f32 0.5, %v850
        %v852 = vsub.f32 1.5, %v851
        %v853 = vmul.f32 %v848, %v852
        %vm854 = vweird.f32 %v804
        %vm855 = vweird.f32 %v848
        %vm856 = vmor %vm854, %vm855
        %v857 = vsel %vm856, %v848, %v853
        %v858 = vrsqrt.pop %v805
        %v859 = vmul.f32 %v858, %v805
        %v860 = vmul.f32 %v859, %v858
        %v861 = vmul.f32 0.5, %v860
        %v862 = vsub.f32 1.5, %v861
        %v863 = vmul.f32 %v858, %v862
        %vm864 = vweird.f32 %v805
        %vm865 = vweird.f32 %v858
        %vm866 = vmor %vm864, %vm865
        %v867 = vsel %vm866, %v858, %v863
        %v868 = vrsqrt.pop %v806
        %v869 = vmul.f32 %v868, %v806
        %v870 = vmul.f32 %v869, %v868
        %v871 = vmul.f32 0.5, %v870
        %v872 = vsub.f32 1.5, %v871
        %v873 = vmul.f32 %v868, %v872
        %vm874 = vweird.f32 %v806
        %vm875 = vweird.f32 %v868
        %vm876 = vmor %vm874, %vm875
        %v877 = vsel %vm876, %v868, %v873
        %v878 = vrsqrt.pop %v807
        %v879 = vmul.f32 %v878, %v807
        %v880 = vmul.f32 %v879, %v878
        %v881 = vmul.f32 0.5, %v880
        %v882 = vsub.f32 1.5, %v881
        %v883 = vmul.f32 %v878, %v882
        %vm884 = vweird.f32 %v807
        %vm885 = vweird.f32 %v878
        %vm886 = vmor %vm884, %vm885
        %v887 = vsel %vm886, %v878, %v883
        %v888 = vmul.f32 %v760, %v817
        %v889 = vmul.f32 %v761, %v827
        %v890 = vmul.f32 %v762, %v837
        %v891 = vmul.f32 %v763, %v847
        %v892 = vmul.f32 %v764, %v857
        %v893 = vmul.f32 %v765, %v867
        %v894 = vmul.f32 %v766, %v877
        %v895 = vmul.f32 %v767, %v887
        %v896 = vld [vmem:[%s3] sm:$0x1]
        %v898 = vperm.slane %v896, 0
        %v900 = vmul.f32 %v888, %v898
        %v901 = vmul.f32 %v889, %v898
        %v902 = vmul.f32 %v890, %v898
        %v903 = vmul.f32 %v891, %v898
        %v904 = vmul.f32 %v892, %v898
        %v905 = vmul.f32 %v893, %v898
        %v906 = vmul.f32 %v894, %v898
        %v907 = vmul.f32 %v895, %v898
        %v908 = vld [vmem:[%s4] sm:$0x1]
        %v910 = vperm.slane %v908, 0
        %v912 = vadd.f32 %v900, %v910
        %v913 = vadd.f32 %v901, %v910
        %v914 = vadd.f32 %v902, %v910
        %v915 = vadd.f32 %v903, %v910
        %v916 = vadd.f32 %v904, %v910
        %v917 = vadd.f32 %v905, %v910
        %v918 = vadd.f32 %v906, %v910
        %v919 = vadd.f32 %v907, %v910
        %v920 = vpack.c.bf16 %v913, %v912
        %v921 = vpack.c.bf16 %v915, %v914
        %v922 = vpack.c.bf16 %v917, %v916
        %v923 = vpack.c.bf16 %v919, %v918
        %v924 = vld [vmem:[#allocation7] sm:$0xff]
        %v925 = vld [vmem:[#allocation7 + $0x8] sm:$0xff]
        %v926 = vld [vmem:[#allocation7 + $0x10] sm:$0xff]
        %v927 = vld [vmem:[#allocation7 + $0x18] sm:$0xff]
        %v928 = vld [vmem:[#allocation7 + $0x20] sm:$0xff]
        %v929 = vld [vmem:[#allocation7 + $0x28] sm:$0xff]
        %v930 = vld [vmem:[#allocation7 + $0x30] sm:$0xff]
        %v931 = vld [vmem:[#allocation7 + $0x38] sm:$0xff]
        %v932 = vld [vmem:[#allocation7 + $0x40] sm:$0xff]
        %v933 = vld [vmem:[#allocation7 + $0x48] sm:$0xff]
        %v934 = vld [vmem:[#allocation7 + $0x50] sm:$0xff]
        %v935 = vld [vmem:[#allocation7 + $0x58] sm:$0xff]
        %v936 = vld [vmem:[#allocation7 + $0x60] sm:$0xff]
        %v937 = vld [vmem:[#allocation7 + $0x68] sm:$0xff]
        %v938 = vld [vmem:[#allocation7 + $0x70] sm:$0xff]
        %v939 = vld [vmem:[#allocation7 + $0x78] sm:$0xff]
        %v956 = vunpack.c.l.b16 %v924
        %v957 = vunpack.c.h.b16 %v924
        %v958 = vunpack.c.l.b16 %v925
        %v959 = vunpack.c.h.b16 %v925
        %v960 = vunpack.c.l.b16 %v926
        %v961 = vunpack.c.h.b16 %v926
        %v962 = vunpack.c.l.b16 %v927
        %v963 = vunpack.c.h.b16 %v927
        %v964 = vunpack.c.l.b16 %v928
        %v965 = vunpack.c.h.b16 %v928
        %v966 = vunpack.c.l.b16 %v929
        %v967 = vunpack.c.h.b16 %v929
        %v968 = vunpack.c.l.b16 %v930
        %v969 = vunpack.c.h.b16 %v930
        %v970 = vunpack.c.l.b16 %v931
        %v971 = vunpack.c.h.b16 %v931
        %v972 = vunpack.c.l.b16 %v932
        %v973 = vunpack.c.h.b16 %v932
        %v974 = vunpack.c.l.b16 %v933
        %v975 = vunpack.c.h.b16 %v933
        %v976 = vunpack.c.l.b16 %v934
        %v977 = vunpack.c.h.b16 %v934
        %v978 = vunpack.c.l.b16 %v935
        %v979 = vunpack.c.h.b16 %v935
        %v980 = vunpack.c.l.b16 %v936
        %v981 = vunpack.c.h.b16 %v936
        %v982 = vunpack.c.l.b16 %v937
        %v983 = vunpack.c.h.b16 %v937
        %v984 = vunpack.c.l.b16 %v938
        %v985 = vunpack.c.h.b16 %v938
        %v986 = vunpack.c.l.b16 %v939
        %v987 = vunpack.c.h.b16 %v939
        %v988 = vpack.c.b16 %v958, %v956
        %v989 = vpack.c.b16 %v959, %v957
        %v990 = vpack.c.b16 %v962, %v960
        %v991 = vpack.c.b16 %v963, %v961
        %v992 = vpack.c.b16 %v966, %v964
        %v993 = vpack.c.b16 %v967, %v965
        %v994 = vpack.c.b16 %v970, %v968
        %v995 = vpack.c.b16 %v971, %v969
        %v996 = vpack.c.b16 %v974, %v972
        %v997 = vpack.c.b16 %v975, %v973
        %v998 = vpack.c.b16 %v978, %v976
        %v999 = vpack.c.b16 %v979, %v977
        %v1000 = vpack.c.b16 %v982, %v980
        %v1001 = vpack.c.b16 %v983, %v981
        %v1002 = vpack.c.b16 %v986, %v984
        %v1003 = vpack.c.b16 %v987, %v985
        %1020 = vmatpush.bf16.msra.mxu0 %v1002
        %1021 = vmatpush.bf16.msra.mxu0 %v1000
        %1022 = vmatpush.bf16.msra.mxu0 %v998
        %1023 = vmatpush.bf16.msra.mxu0 %v996
        %1024 = vmatpush.bf16.msra.mxu0 %v994
        %1025 = vmatpush.bf16.msra.mxu0 %v992
        %1026 = vmatpush.bf16.msra.mxu0 %v990
        %1027 = vmatpush.bf16.msra.mxu0 %v988
        %1028 = vmatmul.bf16.gmra.mxu0 %v920
        %v1029 = vpop.f32.mrf.mxu0
        %v1030 = vadd.f32 0.0, %v1029
        %v1031 = vpop.f32.mrf.mxu0
        %v1032 = vadd.f32 0.0, %v1031
        %1033 = vmatmul.bf16.gmra.mxu0 %v921
        %v1034 = vpop.f32.mrf.mxu0
        %v1035 = vadd.f32 0.0, %v1034
        %v1036 = vpop.f32.mrf.mxu0
        %v1037 = vadd.f32 0.0, %v1036
        %1038 = vmatmul.bf16.gmra.mxu0 %v922
        %v1039 = vpop.f32.mrf.mxu0
        %v1040 = vadd.f32 0.0, %v1039
        %v1041 = vpop.f32.mrf.mxu0
        %v1042 = vadd.f32 0.0, %v1041
        %1043 = vmatmul.bf16.gmra.mxu0 %v923
        %v1044 = vpop.f32.mrf.mxu0
        %v1045 = vadd.f32 0.0, %v1044
        %v1046 = vpop.f32.mrf.mxu0
        %v1047 = vadd.f32 0.0, %v1046
        %1048 = vdwg.mxu0
        %1049 = vmatpush.bf16.msra.mxu0 %v1003
        %1050 = vmatpush.bf16.msra.mxu0 %v1001
        %1051 = vmatpush.bf16.msra.mxu0 %v999
        %1052 = vmatpush.bf16.msra.mxu0 %v997
        %1053 = vmatpush.bf16.msra.mxu0 %v995
        %1054 = vmatpush.bf16.msra.mxu0 %v993
        %1055 = vmatpush.bf16.msra.mxu0 %v991
        %1056 = vmatpush.bf16.msra.mxu0 %v989
        %1057 = vmatmul.bf16.gmra.mxu0 %v920
        %v1058 = vpop.f32.mrf.mxu0
        %v1059 = vadd.f32 0.0, %v1058
        %v1060 = vpop.f32.mrf.mxu0
        %v1061 = vadd.f32 0.0, %v1060
        %1062 = vmatmul.bf16.gmra.mxu0 %v921
        %v1063 = vpop.f32.mrf.mxu0
        %v1064 = vadd.f32 0.0, %v1063
        %v1065 = vpop.f32.mrf.mxu0
        %v1066 = vadd.f32 0.0, %v1065
        %1067 = vmatmul.bf16.gmra.mxu0 %v922
        %v1068 = vpop.f32.mrf.mxu0
        %v1069 = vadd.f32 0.0, %v1068
        %v1070 = vpop.f32.mrf.mxu0
        %v1071 = vadd.f32 0.0, %v1070
        %1072 = vmatmul.bf16.gmra.mxu0 %v923
        %v1073 = vpop.f32.mrf.mxu0
        %v1074 = vadd.f32 0.0, %v1073
        %v1075 = vpop.f32.mrf.mxu0
        %v1076 = vadd.f32 0.0, %v1075
        %1077 = vdwg.mxu0
        %v1078 = vpack.c.bf16 %v1059, %v1030
        %v1079 = vpack.c.bf16 %v1061, %v1032
        %v1080 = vpack.c.bf16 %v1064, %v1035
        %v1081 = vpack.c.bf16 %v1066, %v1037
        %v1082 = vpack.c.bf16 %v1069, %v1040
        %v1083 = vpack.c.bf16 %v1071, %v1042
        %v1084 = vpack.c.bf16 %v1074, %v1045
        %v1085 = vpack.c.bf16 %v1076, %v1047
        %1086 = vst [vmem:[%s304] sm:$0xff] %v1078
        %1087 = vst [vmem:[%s304 + $0x8] sm:$0xff] %v1079
        %1088 = vst [vmem:[%s304 + $0x10] sm:$0xff] %v1080
        %1089 = vst [vmem:[%s304 + $0x18] sm:$0xff] %v1081
        %1090 = vst [vmem:[%s304 + $0x20] sm:$0xff] %v1082
        %1091 = vst [vmem:[%s304 + $0x28] sm:$0xff] %v1083
        %1092 = vst [vmem:[%s304 + $0x30] sm:$0xff] %v1084
        %1093 = vst [vmem:[%s304 + $0x38] sm:$0xff] %v1085
        %s1094 = sand.u32 %s163, 1
        %s1095 = scalar_lea.sflag [#allocation4], %s1094
        %s1096 = sand.u32 %s163, 1
        %s1097 = smul.addr %s1096, 64
        %s1098 = scalar_lea.vmem [#allocation8], %s1097
        // Predicated region
        $region57: #{tpu_custom_call.1} parent=43 // pred_check
          %p1099 = pneg %p173
        $region58: #{tpu_custom_call.1} parent=43 // pred_check_branch
          %1101 = sbr.rel (%p1099) target = $region60
        $region59: #{tpu_custom_call.1} parent=43 // pred_region
          %1103 = vsyncadd %s1095, 0
          %s1104 = smul.addr %s24, 16
          %s1105 = smul.addr %s1104, 4
          %s1106 = scalar_lea.hbm %s6, %s1105
          %s1107 = sshll.u32 %s1098, 4
          %s1108 = int_to_ptr.vmem [resolvable:$true] %s1107
          %s1109 = sshll.u32 %s1106, 4
          %s1110 = int_to_ptr.hbm [resolvable:$true] %s1109
          %1115 = dma.vmem_to_hbm [thread:$0]  %s1108, 1024, %s1110, %s1095, 128, 128, 8
        $region60: #{tpu_custom_call.1} parent=43 // pred_fallthru
          _
      $region44: #{tpu_custom_call.1} parent=5 // pred_fallthru
        _
      %p1116 = scmp.le.s32.totalorder 2, %s19
      // Predicated region
      $region61: #{tpu_custom_call.1} parent=5 // pred_check
        %p1117 = pneg %p1116
      $region62: #{tpu_custom_call.1} parent=5 // pred_check_branch
        %1119 = sbr.rel (%p1117) target = $region64
      $region63: #{tpu_custom_call.1} parent=5 // pred_region
        %s1120 = ssub.s32 %s19, 2
        // Predicated region
        $region65: #{tpu_custom_call.1} parent=63 // pred_check
          %p1121 = pneg %p179
        $region66: #{tpu_custom_call.1} parent=63 // pred_check_branch
          %1123 = sbr.rel (%p1121) target = $region68
        $region67: #{tpu_custom_call.1} parent=63 // pred_region
          %s1124 = sand.u32 %s164, 1
          %s1125 = scalar_lea.sflag [#allocation4], %s1124
          %s1126 = sand.u32 %s164, 1
          %s1127 = smul.addr %s1126, 64
          %s1128 = scalar_lea.vmem [#allocation8], %s1127
          %1130 = dma.done %s1125, 1024
        $region68: #{tpu_custom_call.1} parent=63 // pred_fallthru
          _
      $region64: #{tpu_custom_call.1} parent=5 // pred_fallthru
        _
    $region6: #{tpu_custom_call.1} parent=1 // loop_footer
      %s23 = sadd.s32 1, %s19
    $region7: #{tpu_custom_call.1} parent=1 // loop_footer_branch
      %18 = sbr.rel target = $region3
    $region8: #{tpu_custom_call.1} parent=1 // loop_exit
      _
    %1131 = vsyncpa [#allocation3], 1
    %s1132 = scalar_lea.sflag [#allocation3], 1
    %1133 = vsyncpa %s1132, 1
    %1134 = vsyncpa [#allocation6], 1
    %1135 = vsyncpa [#allocation4], 1
    %s1136 = scalar_lea.sflag [#allocation4], 1
    %1137 = vsyncpa %s1136, 1

</llo_original>
